<compile_context>
chip_gen: v7x
topology: tpu7x:2x2x1
jax: 0.10.0
libtpu: 0.0.40
codegen_flags: <defaults>
</compile_context>

<pallas_src>
import functools

import jax
import jax.numpy as jnp
from jax.experimental import pallas as pl
from jax.experimental.pallas import tpu as pltpu


# ----------------------------- kernels --------------------------------------


def _conv_stats_kernel(p_ref, w_ref, sum_ref, ssq_ref):
    """Pass 1: conv tile = patches @ W (bf16 in, f32 acc); accumulate per-channel
    sum / sum-of-squares into a resident (1, Cout) partial-stats block (one
    block per shard of the leading 'parallel' axis)."""
    i = pl.program_id(1)  # M-tile index within this shard ("arbitrary" axis)

    conv = jnp.dot(p_ref[...], w_ref[...], preferred_element_type=jnp.float32)

    @pl.when(i == 0)
    def _init():
        sum_ref[...] = jnp.zeros_like(sum_ref)
        ssq_ref[...] = jnp.zeros_like(ssq_ref)

    sum_ref[...] += jnp.sum(conv, axis=0, keepdims=True)
    ssq_ref[...] += jnp.sum(conv * conv, axis=0, keepdims=True)


def _conv_bn_lrelu_kernel(p_ref, w_ref, ss_ref, o_ref, *, negative_slope):
    """Pass 2: recompute conv tile, apply precomputed BN scale/shift and
    LeakyReLU, store the f32 output tile."""
    conv = jnp.dot(p_ref[...], w_ref[...], preferred_element_type=jnp.float32)

    ss = ss_ref[...]                      # (2, Cout) f32: row 0 scale, row 1 shift
    y = conv * ss[0:1, :] + ss[1:2, :]
    o_ref[...] = jnp.where(y >= 0, y, negative_slope * y)


# ----------------------------- wrapper ---------------------------------------


def _round_up(a, b):
    return (a + b - 1) // b * b


def convolution_forward(x, conv_w, conv_b, bn_gamma, bn_beta,
                        *, eps=1e-5, negative_slope=0.01):
    """x: (N, Cin, H, W) f32. conv_w: (Cout, Cin, 3, 3). Returns (N, Cout, H-2, W-2) f32."""
    N, Cin, H, W = x.shape
    Cout, _, KH, KW = conv_w.shape
    Ho, Wo = H - KH + 1, W - KW + 1
    M = N * Ho * Wo
    Kd = Cin * KH * KW

    # Contraction dim kept near its true size (sublane-rounded), NOT 128-padded.
    KD_PAD = _round_up(Kd, 8)
    NS = 2                                   # pass-1 stat shards (v7x megacore)
    # 1024-row tiles for realistic sizes (review-recommended sweet spot that
    # also respects v7x's 64 MiB VMEM); smaller for tiny problems so the
    # accumulation + shard paths still get exercised.
    if M >= 8 * 1024:
        M_TILE = 1024
    elif M >= 1024:
        M_TILE = 256
    else:
        M_TILE = 128
    M_PAD = _round_up(M, NS * M_TILE)
    n_shard = M_PAD // (NS * M_TILE)         # M tiles per stats shard
    n_m = M_PAD // M_TILE                    # total M tiles

    # im2col (wrapper glue; fused extraction is the remaining TODO above).
    # Column order (ci, ky, kx) matches PyTorch's Conv2d weight flattening.
    # Zero row-padding is exact: bias is dropped, so zero rows -> zero conv
    # output -> zero contribution to the stats (inv_m uses the true M).
    xh = jnp.transpose(x, (0, 2, 3, 1)).astype(jnp.bfloat16)        # NHWC bf16
    cols = [xh[:, dy:dy + Ho, dx:dx + Wo, :] for dy in range(KH) for dx in range(KW)]
    patches = jnp.stack(cols, axis=-1)                              # (N,Ho,Wo,Cin,KH*KW)
    patches = patches.reshape(M, Kd)
    patches = jnp.pad(patches, ((0, M_PAD - M), (0, KD_PAD - Kd)))

    # conv bias is a no-op under train-mode BatchNorm (mean-cancelled).
    del conv_b

    w_flat = conv_w.reshape(Cout, Kd).T                             # (Kd, Cout)
    w_flat = jnp.pad(w_flat, ((0, KD_PAD - Kd), (0, 0))).astype(jnp.bfloat16)

    # ---- pass 1: sharded per-channel sum / sum-of-squares of the conv output ----
    csum, cssq = pl.pallas_call(
        _conv_stats_kernel,
        out_shape=(jax.ShapeDtypeStruct((NS, 1, Cout), jnp.float32),
                   jax.ShapeDtypeStruct((NS, 1, Cout), jnp.float32)),
        grid=(NS, n_shard),
        in_specs=[
            pl.BlockSpec((M_TILE, KD_PAD), lambda s, i: (s * n_shard + i, 0)),
            pl.BlockSpec((KD_PAD, Cout), lambda s, i: (0, 0)),   # resident weights
        ],
        out_specs=[
            pl.BlockSpec((None, 1, Cout), lambda s, i: (s, 0, 0)),
            pl.BlockSpec((None, 1, Cout), lambda s, i: (s, 0, 0)),
        ],
        compiler_params=pltpu.CompilerParams(
            dimension_semantics=("parallel", "arbitrary")),
    )(patches, w_flat)

    # ---- tiny wrapper-side reduction: fold stats + gamma/beta into scale/shift ----
    tot = jnp.sum(csum, axis=(0, 1))                 # (Cout,)
    totsq = jnp.sum(cssq, axis=(0, 1))
    mean = tot / M
    var = totsq / M - mean * mean                    # biased (train-mode) variance
    inv_std = jax.lax.rsqrt(var + eps)
    scale = bn_gamma.astype(jnp.float32) * inv_std
    shift = bn_beta.astype(jnp.float32) - mean * scale
    scale_shift = jnp.stack([scale, shift], axis=0)  # (2, Cout) f32

    # ---- pass 2: recompute conv tile, apply scale/shift + LeakyReLU ----
    kernel2 = functools.partial(_conv_bn_lrelu_kernel, negative_slope=negative_slope)
    out_rows = pl.pallas_call(
        kernel2,
        out_shape=jax.ShapeDtypeStruct((M_PAD, Cout), jnp.float32),
        grid=(n_m,),
        in_specs=[
            pl.BlockSpec((M_TILE, KD_PAD), lambda i: (i, 0)),
            pl.BlockSpec((KD_PAD, Cout), lambda i: (0, 0)),      # resident weights
            pl.BlockSpec((2, Cout), lambda i: (0, 0)),           # resident scale/shift
        ],
        out_specs=pl.BlockSpec((M_TILE, Cout), lambda i: (i, 0)),
        compiler_params=pltpu.CompilerParams(
            dimension_semantics=("parallel",)),
    )(patches, w_flat, scale_shift)

    # Strip padding and return NCHW.
    out = out_rows[:M].reshape(N, Ho, Wo, Cout).transpose(0, 3, 1, 2)
    return out


# ----------------------------- reference & test ------------------------------


def _reference(x, conv_w, conv_b, bn_gamma, bn_beta):
    conv = jax.lax.conv_general_dilated(
        x, conv_w, window_strides=(1, 1), padding="VALID",
        dimension_numbers=("NCHW", "OIHW", "NCHW"))
    conv = conv + conv_b[None, :, None, None]
    mean = conv.mean(axis=(0, 2, 3), keepdims=True)
    var = ((conv - mean) ** 2).mean(axis=(0, 2, 3), keepdims=True)
    y = (conv - mean) * jax.lax.rsqrt(var + 1e-5)
    y = y * bn_gamma[None, :, None, None] + bn_beta[None, :, None, None]
    return jnp.where(y >= 0, y, 0.01 * y)


if __name__ == "__main__":
    key = jax.random.PRNGKey(0)
    N, Cin, H, W = 2, 4, 16, 16
    Cout, K = 64, 3

    kx, kw, kb = jax.random.split(key, 3)
    x = jax.random.normal(kx, (N, Cin, H, W), dtype=jnp.float32)

    # Deterministic parameter init (Conv2d default-style uniform; BN gamma=1, beta=0).
    fan_in = Cin * K * K
    bound = 1.0 / (fan_in ** 0.5)
    conv_w = jax.random.uniform(kw, (Cout, Cin, K, K), minval=-bound, maxval=bound,
                                dtype=jnp.float32)
    conv_b = jax.random.uniform(kb, (Cout,), minval=-bound, maxval=bound,
                                dtype=jnp.float32)
    bn_gamma = jnp.ones((Cout,), jnp.float32)
    bn_beta = jnp.zeros((Cout,), jnp.float32)

    fwd = jax.jit(convolution_forward)
    out = fwd(x, conv_w, conv_b, bn_gamma, bn_beta)
    jax.block_until_ready(out)
    assert out.shape == (N, Cout, H - 2, W - 2)

    ref = _reference(x, conv_w, conv_b, bn_gamma, bn_beta)
    err = float(jnp.max(jnp.abs(out - ref)))
    assert err < 0.1, f"max abs err vs reference too large: {err}"
    print("KERNEL_OK")
</pallas_src>

<mosaic_0001>
module attributes {stable_mosaic.version = 11 : i64} {
  func.func @_conv_stats_kernel(%arg0: i32, %arg1: i32, %arg2: memref<128x40xbf16, #tpu.memory_space<vmem>>, %arg3: memref<40x64xbf16, #tpu.memory_space<vmem>>, %arg4: memref<1x1x64xf32, #tpu.memory_space<vmem>>, %arg5: memref<1x1x64xf32, #tpu.memory_space<vmem>>) attributes {dimension_semantics = [#tpu.dimension_semantics<parallel>, #tpu.dimension_semantics<arbitrary>], iteration_bounds = array<i64: 2, 2>, scalar_prefetch = 0 : i64, scratch_operands = 0 : i64, tpu.core_type = #tpu.core_type<tc>, window_params = [{transform_indices = @transform_0, window_bounds = array<i64: 128, 40>}, {pipeline_mode = #tpu.pipeline_mode<synchronous>, transform_indices = @transform_1, window_bounds = array<i64: 40, 64>}, {transform_indices = @transform_2, window_bounds = array<i64: 1, 1, 64>}, {transform_indices = @transform_3, window_bounds = array<i64: 1, 1, 64>}]} {
    %c0 = arith.constant 0 : index
    %c0_0 = arith.constant 0 : index
    %0 = vector.load %arg2[%c0, %c0_0] : memref<128x40xbf16, #tpu.memory_space<vmem>>, vector<128x40xbf16>
    %c0_1 = arith.constant 0 : index
    %c0_2 = arith.constant 0 : index
    %1 = vector.load %arg3[%c0_1, %c0_2] : memref<40x64xbf16, #tpu.memory_space<vmem>>, vector<40x64xbf16>
    %cst = arith.constant dense<0.000000e+00> : vector<128x64xf32>
    %2 = tpu.matmul %0, %1, %cst {dimension_numbers = #tpu.dot_dimension_numbers<[1], [0], [0], [1], [0, 0, 1, 1], [], []>} : vector<128x40xbf16>, vector<40x64xbf16>, vector<128x64xf32> -> vector<128x64xf32>
    %c0_i32 = arith.constant 0 : i32
    %3 = arith.cmpi eq, %arg1, %c0_i32 : i32
    %4 = arith.extui %3 : i1 to i32
    %c0_i32_3 = arith.constant 0 : i32
    %5 = arith.cmpi ne, %4, %c0_i32_3 : i32
    scf.if %5 {
      %cst_18 = arith.constant 0.000000e+00 : f32
      %23 = vector.broadcast %cst_18 : f32 to vector<1x64xf32>
      %c0_19 = arith.constant 0 : index
      %c0_20 = arith.constant 0 : index
      %c0_21 = arith.constant 0 : index
      %24 = vector.load %arg4[%c0_19, %c0_20, %c0_21] : memref<1x1x64xf32, #tpu.memory_space<vmem>>, vector<1x1x64xf32>
      %25 = vector.shape_cast %24 : vector<1x1x64xf32> to vector<1x64xf32>
      %26 = vector.shape_cast %23 : vector<1x64xf32> to vector<1x1x64xf32>
      tpu.vector_store %arg4[%c0_19, %c0_20, %c0_21], %26 {strides = array<i32>} : memref<1x1x64xf32, #tpu.memory_space<vmem>>, vector<1x1x64xf32>,
      %cst_22 = arith.constant 0.000000e+00 : f32
      %27 = vector.broadcast %cst_22 : f32 to vector<1x64xf32>
      %c0_23 = arith.constant 0 : index
      %c0_24 = arith.constant 0 : index
      %c0_25 = arith.constant 0 : index
      %28 = vector.load %arg5[%c0_23, %c0_24, %c0_25] : memref<1x1x64xf32, #tpu.memory_space<vmem>>, vector<1x1x64xf32>
      %29 = vector.shape_cast %28 : vector<1x1x64xf32> to vector<1x64xf32>
      %30 = vector.shape_cast %27 : vector<1x64xf32> to vector<1x1x64xf32>
      tpu.vector_store %arg5[%c0_23, %c0_24, %c0_25], %30 {strides = array<i32>} : memref<1x1x64xf32, #tpu.memory_space<vmem>>, vector<1x1x64xf32>,
    } else {
    }
    %c0_4 = arith.constant 0 : index
    %c0_5 = arith.constant 0 : index
    %c0_6 = arith.constant 0 : index
    %6 = vector.load %arg4[%c0_4, %c0_5, %c0_6] : memref<1x1x64xf32, #tpu.memory_space<vmem>>, vector<1x1x64xf32>
    %7 = vector.shape_cast %6 : vector<1x1x64xf32> to vector<1x64xf32>
    %cst_7 = arith.constant dense<0.000000e+00> : vector<64xf32>
    %8 = vector.multi_reduction <add>, %2, %cst_7 [0] : vector<128x64xf32> to vector<64xf32>
    %9 = vector.shape_cast %8 : vector<64xf32> to vector<1x64xf32>
    %10 = arith.addf %7, %9 : vector<1x64xf32>
    %c0_8 = arith.constant 0 : index
    %c0_9 = arith.constant 0 : index
    %c0_10 = arith.constant 0 : index
    %11 = vector.load %arg4[%c0_8, %c0_9, %c0_10] : memref<1x1x64xf32, #tpu.memory_space<vmem>>, vector<1x1x64xf32>
    %12 = vector.shape_cast %11 : vector<1x1x64xf32> to vector<1x64xf32>
    %13 = vector.shape_cast %10 : vector<1x64xf32> to vector<1x1x64xf32>
    tpu.vector_store %arg4[%c0_8, %c0_9, %c0_10], %13 {strides = array<i32>} : memref<1x1x64xf32, #tpu.memory_space<vmem>>, vector<1x1x64xf32>,
    %c0_11 = arith.constant 0 : index
    %c0_12 = arith.constant 0 : index
    %c0_13 = arith.constant 0 : index
    %14 = vector.load %arg5[%c0_11, %c0_12, %c0_13] : memref<1x1x64xf32, #tpu.memory_space<vmem>>, vector<1x1x64xf32>
    %15 = vector.shape_cast %14 : vector<1x1x64xf32> to vector<1x64xf32>
    %16 = arith.mulf %2, %2 : vector<128x64xf32>
    %cst_14 = arith.constant dense<0.000000e+00> : vector<64xf32>
    %17 = vector.multi_reduction <add>, %16, %cst_14 [0] : vector<128x64xf32> to vector<64xf32>
    %18 = vector.shape_cast %17 : vector<64xf32> to vector<1x64xf32>
    %19 = arith.addf %15, %18 : vector<1x64xf32>
    %c0_15 = arith.constant 0 : index
    %c0_16 = arith.constant 0 : index
    %c0_17 = arith.constant 0 : index
    %20 = vector.load %arg5[%c0_15, %c0_16, %c0_17] : memref<1x1x64xf32, #tpu.memory_space<vmem>>, vector<1x1x64xf32>
    %21 = vector.shape_cast %20 : vector<1x1x64xf32> to vector<1x64xf32>
    %22 = vector.shape_cast %19 : vector<1x64xf32> to vector<1x1x64xf32>
    tpu.vector_store %arg5[%c0_15, %c0_16, %c0_17], %22 {strides = array<i32>} : memref<1x1x64xf32, #tpu.memory_space<vmem>>, vector<1x1x64xf32>,
    return
  }
  func.func @transform_0(%arg0: i32, %arg1: i32) -> (i32, i32) {
    %c2_i32 = arith.constant 2 : i32
    %0 = arith.muli %arg0, %c2_i32 : i32
    %1 = arith.addi %0, %arg1 : i32
    %c0_i32 = arith.constant 0 : i32
    %c0_i32_0 = arith.constant 0 : i32
    return %1, %c0_i32 : i32, i32
  }
  func.func @transform_1(%arg0: i32, %arg1: i32) -> (i32, i32) {
    %c0_i32 = arith.constant 0 : i32
    %c0_i32_0 = arith.constant 0 : i32
    %c0_i32_1 = arith.constant 0 : i32
    return %c0_i32, %c0_i32_0 : i32, i32
  }
  func.func @transform_2(%arg0: i32, %arg1: i32) -> (i32, i32, i32) {
    %c0_i32 = arith.constant 0 : i32
    %c0_i32_0 = arith.constant 0 : i32
    %c0_i32_1 = arith.constant 0 : i32
    return %arg0, %c0_i32, %c0_i32_0 : i32, i32, i32
  }
  func.func @transform_3(%arg0: i32, %arg1: i32) -> (i32, i32, i32) {
    %c0_i32 = arith.constant 0 : i32
    %c0_i32_0 = arith.constant 0 : i32
    %c0_i32_1 = arith.constant 0 : i32
    return %arg0, %c0_i32, %c0_i32_0 : i32, i32, i32
  }
}

module attributes {stable_mosaic.version = 11 : i64} {
  func.func @_conv_bn_lrelu_kernel(%arg0: i32, %arg1: memref<128x40xbf16, #tpu.memory_space<vmem>>, %arg2: memref<40x64xbf16, #tpu.memory_space<vmem>>, %arg3: memref<2x64xf32, #tpu.memory_space<vmem>>, %arg4: memref<128x64xf32, #tpu.memory_space<vmem>>) attributes {dimension_semantics = [#tpu.dimension_semantics<parallel>], iteration_bounds = array<i64: 4>, scalar_prefetch = 0 : i64, scratch_operands = 0 : i64, tpu.core_type = #tpu.core_type<tc>, window_params = [{transform_indices = @transform_0, window_bounds = array<i64: 128, 40>}, {pipeline_mode = #tpu.pipeline_mode<synchronous>, transform_indices = @transform_1, window_bounds = array<i64: 40, 64>}, {pipeline_mode = #tpu.pipeline_mode<synchronous>, transform_indices = @transform_2, window_bounds = array<i64: 2, 64>}, {transform_indices = @transform_3, window_bounds = array<i64: 128, 64>}]} {
    %c0 = arith.constant 0 : index
    %c0_0 = arith.constant 0 : index
    %0 = vector.load %arg1[%c0, %c0_0] : memref<128x40xbf16, #tpu.memory_space<vmem>>, vector<128x40xbf16>
    %c0_1 = arith.constant 0 : index
    %c0_2 = arith.constant 0 : index
    %1 = vector.load %arg2[%c0_1, %c0_2] : memref<40x64xbf16, #tpu.memory_space<vmem>>, vector<40x64xbf16>
    %cst = arith.constant dense<0.000000e+00> : vector<128x64xf32>
    %2 = tpu.matmul %0, %1, %cst {dimension_numbers = #tpu.dot_dimension_numbers<[1], [0], [0], [1], [0, 0, 1, 1], [], []>} : vector<128x40xbf16>, vector<40x64xbf16>, vector<128x64xf32> -> vector<128x64xf32>
    %c0_3 = arith.constant 0 : index
    %c0_4 = arith.constant 0 : index
    %3 = vector.load %arg3[%c0_3, %c0_4] : memref<2x64xf32, #tpu.memory_space<vmem>>, vector<2x64xf32>
    %4 = vector.extract_strided_slice %3 {offsets = [0, 0], sizes = [1, 64], strides = [1, 1]} : vector<2x64xf32> to vector<1x64xf32>
    %5 = vector.broadcast %4 : vector<1x64xf32> to vector<128x64xf32>
    %6 = arith.mulf %2, %5 : vector<128x64xf32>
    %7 = vector.extract_strided_slice %3 {offsets = [1, 0], sizes = [1, 64], strides = [1, 1]} : vector<2x64xf32> to vector<1x64xf32>
    %8 = vector.broadcast %7 : vector<1x64xf32> to vector<128x64xf32>
    %9 = arith.addf %6, %8 : vector<128x64xf32>
    %cst_5 = arith.constant 0.000000e+00 : f32
    %10 = vector.broadcast %cst_5 : f32 to vector<128x64xf32>
    %11 = arith.cmpf oge, %9, %10 : vector<128x64xf32>
    %cst_6 = arith.constant 0.00999999977 : f32
    %12 = vector.broadcast %cst_6 : f32 to vector<128x64xf32>
    %13 = arith.mulf %12, %9 : vector<128x64xf32>
    %14 = arith.select %11, %9, %13 : vector<128x64xi1>, vector<128x64xf32>
    %c0_7 = arith.constant 0 : index
    %c0_8 = arith.constant 0 : index
    %15 = vector.load %arg4[%c0_7, %c0_8] : memref<128x64xf32, #tpu.memory_space<vmem>>, vector<128x64xf32>
    tpu.vector_store %arg4[%c0_7, %c0_8], %14 {strides = array<i32>} : memref<128x64xf32, #tpu.memory_space<vmem>>, vector<128x64xf32>,
    return
  }
  func.func @transform_0(%arg0: i32) -> (i32, i32) {
    %c0_i32 = arith.constant 0 : i32
    %c0_i32_0 = arith.constant 0 : i32
    return %arg0, %c0_i32 : i32, i32
  }
  func.func @transform_1(%arg0: i32) -> (i32, i32) {
    %c0_i32 = arith.constant 0 : i32
    %c0_i32_0 = arith.constant 0 : i32
    %c0_i32_1 = arith.constant 0 : i32
    return %c0_i32, %c0_i32_0 : i32, i32
  }
  func.func @transform_2(%arg0: i32) -> (i32, i32) {
    %c0_i32 = arith.constant 0 : i32
    %c0_i32_0 = arith.constant 0 : i32
    %c0_i32_1 = arith.constant 0 : i32
    return %c0_i32, %c0_i32_0 : i32, i32
  }
  func.func @transform_3(%arg0: i32) -> (i32, i32) {
    %c0_i32 = arith.constant 0 : i32
    %c0_i32_0 = arith.constant 0 : i32
    return %arg0, %c0_i32 : i32, i32
  }
}

</mosaic_0001>

<llo_original>
// kernel: convolution_forward.2
$region0: #{convolution_forward.2}
  #allocation0 [shape = 'u32[]', space=smem, size = 0x4, offset = 0x4, fixed_abs, tag = 'smem constant byte address 0x4 - core index']
  #allocation1 [shape = 'u32[144,128]{1,0:T(1,128)}', space=vmem, size = 0x12000, scoped, tag = 'internal scratch']
  %s0 = inlined_call_operand.vmem [shape: bf16[512,40], index: 0, kind: input, shape index: {}]
  %s1 = inlined_call_operand.vmem [shape: bf16[40,64], index: 1, kind: input, shape index: {}]
  %s2 = inlined_call_operand.vmem [shape: f32[2,1,64], index: 2, kind: output, shape index: {0}]
  %s3 = inlined_call_operand.vmem [shape: f32[2,1,64], index: 3, kind: output, shape index: {1}]
  %4 = xla_tuple %s2, %s3
  %s5 = sld [smem:[#allocation0]]
  $region53: #{convolution_forward.2} parent=0
    _
  %s7 = ssub.s32 1, %s5
  %s8 = scalar_select 0, %s7, %s5
  loop: start=0, step=1, limit=6
  $region2: #{convolution_forward.2} parent=0 // loop_pre_header
    _
  $region3: #{convolution_forward.2} parent=0 // loop_header
    %s10 = sphi 0, %s14
    %p11 = scmp.ge.s32.totalorder %s10, 6
    %s17 = sphi 0, %s29
    %s18 = sphi 0, %s25
    %s19 = sphi 0, %s17
    %s20 = sphi 0, %s18
    %s21 = sphi 0, %s19
    %s22 = sphi 0, %s20
    %s36 = sphi 0, %s38
    %s39 = sphi 0, %s36
    %s40 = sphi 0, %s39
    %s56 = sphi 0, %s40
    %s60 = sphi 0, %s60
    %s62 = sphi 0, %s60
    %s63 = sphi 0, %s62
    %s77 = sphi 0, %s63
    %s83 = sphi 0, %s85
    %s86 = sphi 0, %s83
    %s87 = sphi 0, %s86
    %s103 = sphi 0, %s87
    %s109 = sphi 0, %s111
    %s112 = sphi 0, %s109
    %s113 = sphi 0, %s112
    %s129 = sphi 0, %s113
  $region4: #{convolution_forward.2} parent=0 // loop_header_branch
    %13 = sbr.rel (%p11) target = $region8
  $region5: #{convolution_forward.2} parent=0 // loop_body
    %s15 = ssub.s32 %s10, 1
    %s16 = ssub.s32 %s10, 2
    %s23 = sadd.s32 1, %s18
    %p24 = scmp.ge.s32.totalorder %s23, 2
    %s25 = scalar_select %p24, 0, %s23
    %s26 = sadd.s32 1, %s17
    %s27 = scalar_select %p24, %s26, %s17
    %p28 = scmp.ge.s32.totalorder %s27, 2
    %s29 = scalar_select %p28, 0, %s27
    %s30 = smul.u32 %s17, 2
    %s31 = sadd.s32 %s30, %s18
    %s32 = smul.u32 %s29, 2
    %s33 = sadd.s32 %s32, %s25
    %s34 = ssub.s32 %s31, %s33
    %p35 = scmp.eq.s32.totalorder %s34, 0
    %s37 = sadd.s32 %s36, 1
    %s38 = scalar_select %p35, %s36, %s37
    %p41 = pneg %p35
    %p42 = scmp.eq.s32.totalorder %s10, 3
    %p43 = por %p41, %p42
    %p44 = scmp.ne.s32.totalorder %s36, %s39
    %p45 = scmp.eq.s32.totalorder %s10, 0
    %p46 = por %p44, %p45
    %p47 = scmp.ne.s32.totalorder %s36, %s39
    %p48 = scmp.eq.s32.totalorder %s15, 3
    %p49 = por %p47, %p48
    %p50 = scmp.ne.s32.totalorder %s39, %s40
    %p51 = scmp.eq.s32.totalorder %s15, 0
    %p52 = por %p50, %p51
    %p53 = scmp.ne.s32.totalorder %s39, %s40
    %p54 = scmp.eq.s32.totalorder %s16, 3
    %p55 = por %p53, %p54
    %p57 = scmp.ne.s32.totalorder %s40, %s56
    %p58 = scmp.eq.s32.totalorder %s16, 0
    %p59 = por %p57, %p58
    %s61 = sadd.s32 %s60, 1
    %p64 = scmp.eq.s32.totalorder %s10, 3
    %p65 = scmp.ne.s32.totalorder %s60, %s62
    %p66 = scmp.eq.s32.totalorder %s10, 0
    %p67 = por %p65, %p66
    %p68 = scmp.ne.s32.totalorder %s60, %s62
    %p69 = scmp.eq.s32.totalorder %s15, 3
    %p70 = por %p68, %p69
    %p71 = scmp.ne.s32.totalorder %s62, %s63
    %p72 = scmp.eq.s32.totalorder %s15, 0
    %p73 = por %p71, %p72
    %p74 = scmp.ne.s32.totalorder %s62, %s63
    %p75 = scmp.eq.s32.totalorder %s16, 3
    %p76 = por %p74, %p75
    %p78 = scmp.ne.s32.totalorder %s63, %s77
    %p79 = scmp.eq.s32.totalorder %s16, 0
    %p80 = por %p78, %p79
    %s81 = ssub.s32 %s17, %s29
    %p82 = scmp.eq.s32.totalorder %s81, 0
    %s84 = sadd.s32 %s83, 1
    %s85 = scalar_select %p82, %s83, %s84
    %p88 = pneg %p82
    %p89 = scmp.eq.s32.totalorder %s10, 3
    %p90 = por %p88, %p89
    %p91 = scmp.ne.s32.totalorder %s83, %s86
    %p92 = scmp.eq.s32.totalorder %s10, 0
    %p93 = por %p91, %p92
    %p94 = scmp.ne.s32.totalorder %s83, %s86
    %p95 = scmp.eq.s32.totalorder %s15, 3
    %p96 = por %p94, %p95
    %p97 = scmp.ne.s32.totalorder %s86, %s87
    %p98 = scmp.eq.s32.totalorder %s15, 0
    %p99 = por %p97, %p98
    %p100 = scmp.ne.s32.totalorder %s86, %s87
    %p101 = scmp.eq.s32.totalorder %s16, 3
    %p102 = por %p100, %p101
    %p104 = scmp.ne.s32.totalorder %s87, %s103
    %p105 = scmp.eq.s32.totalorder %s16, 0
    %p106 = por %p104, %p105
    %s107 = ssub.s32 %s17, %s29
    %p108 = scmp.eq.s32.totalorder %s107, 0
    %s110 = sadd.s32 %s109, 1
    %s111 = scalar_select %p108, %s109, %s110
    %p114 = pneg %p108
    %p115 = scmp.eq.s32.totalorder %s10, 3
    %p116 = por %p114, %p115
    %p117 = scmp.ne.s32.totalorder %s109, %s112
    %p118 = scmp.eq.s32.totalorder %s10, 0
    %p119 = por %p117, %p118
    %p120 = scmp.ne.s32.totalorder %s109, %s112
    %p121 = scmp.eq.s32.totalorder %s15, 3
    %p122 = por %p120, %p121
    %p123 = scmp.ne.s32.totalorder %s112, %s113
    %p124 = scmp.eq.s32.totalorder %s15, 0
    %p125 = por %p123, %p124
    %p126 = scmp.ne.s32.totalorder %s112, %s113
    %p127 = scmp.eq.s32.totalorder %s16, 3
    %p128 = por %p126, %p127
    %p130 = scmp.ne.s32.totalorder %s113, %s129
    %p131 = scmp.eq.s32.totalorder %s16, 0
    %p132 = por %p130, %p131
    %p133 = scmp.le.s32.totalorder 1, %s10
    %p134 = scmp.lt.s32.totalorder %s10, 5
    %p135 = pnand %p133, %p134
    %p136 = pneg %p135
    // Predicated region
    $region9: #{convolution_forward.2} parent=5 // pred_check
      _
    $region10: #{convolution_forward.2} parent=5 // pred_check_branch
      %138 = sbr.rel (%p135) target = $region12
    $region11: #{convolution_forward.2} parent=5 // pred_region
      %s139 = ssub.s32 %s10, 1
      // Predicated region
      $region13: #{convolution_forward.2} parent=11 // pred_check
        %p140 = pneg %p73
      $region14: #{convolution_forward.2} parent=11 // pred_check_branch
        %142 = sbr.rel (%p140) target = $region16
      $region15: #{convolution_forward.2} parent=11 // pred_region
        _
      $region16: #{convolution_forward.2} parent=11 // pred_fallthru
        _
    $region12: #{convolution_forward.2} parent=5 // pred_fallthru
      _
    %p143 = scmp.lt.s32.totalorder %s10, 4
    // Predicated region
    $region17: #{convolution_forward.2} parent=5 // pred_check
      %p144 = pneg %p143
    $region18: #{convolution_forward.2} parent=5 // pred_check_branch
      %146 = sbr.rel (%p144) target = $region20
    $region19: #{convolution_forward.2} parent=5 // pred_region
      // Predicated region
      $region21: #{convolution_forward.2} parent=19 // pred_check
        %p147 = pneg %p46
      $region22: #{convolution_forward.2} parent=19 // pred_check_branch
        %149 = sbr.rel (%p147) target = $region24
      $region23: #{convolution_forward.2} parent=19 // pred_region
        %s150 = smul.u32 %s17, 2
        %s151 = sadd.s32 %s150, %s18
        %s152 = smul.u32 16, %s151
        %p153 = scmp.lt.s32.totalorder %s152, 63
        %s154 = scalar_select %p153, %s152, 63
        %s155 = smul.addr %s154, 4
        %s156 = scalar_lea.vmem %s0, %s155
        %s157 = smul.u32 %s17, 2
        %s158 = sadd.s32 %s157, %s18
        %s159 = smul.u32 16, %s158
      $region24: #{convolution_forward.2} parent=19 // pred_fallthru
        _
    $region20: #{convolution_forward.2} parent=5 // pred_fallthru
      _
    %p160 = scmp.le.s32.totalorder 1, %s10
    %p161 = scmp.lt.s32.totalorder %s10, 5
    %p162 = pnand %p160, %p161
    %p163 = pneg %p162
    // Predicated region
    $region25: #{convolution_forward.2} parent=5 // pred_check
      _
    $region26: #{convolution_forward.2} parent=5 // pred_check_branch
      %165 = sbr.rel (%p162) target = $region28
    $region27: #{convolution_forward.2} parent=5 // pred_region
      %s166 = ssub.s32 %s10, 1
      %s167 = smul.u32 %s19, 2
      %s168 = sadd.s32 %s167, %s20
      %s169 = smul.u32 16, %s168
      %p170 = scmp.lt.s32.totalorder %s169, 63
      %s171 = scalar_select %p170, %s169, 63
      %s172 = smul.addr %s171, 4
      %s173 = scalar_lea.vmem %s0, %s172
      %p174 = pneg %p52
      %p175 = pneg %p49
      %p176 = pneg %p73
      %p177 = pneg %p70
      %p178 = pneg %p99
      %p179 = pneg %p96
      %p180 = scmp.lt.s32.totalorder %s19, 1
      %s181 = scalar_select %p180, %s19, 1
      %s182 = scalar_lea.vmem %s2, %s181
      %p183 = pneg %p125
      %p184 = pneg %p122
      %p185 = scmp.lt.s32.totalorder %s19, 1
      %s186 = scalar_select %p185, %s19, 1
      %s187 = scalar_lea.vmem %s3, %s186
      %s188 = smul.u32 %s19, 2
      %s189 = sadd.s32 %s188, %s20
      %s190 = smul.u32 16, %s189
      %p191 = scmp.lt.s32.totalorder %s190, 63
      %s192 = scalar_select %p191, %s190, 63
      %s193 = smul.addr %s192, 4
      %s194 = scalar_lea.vmem %s0, %s193
      %s195 = smul.u32 %s19, 2
      %s196 = sadd.s32 %s195, %s20
      %s197 = smul.u32 16, %s196
      %p198 = scmp.lt.s32.totalorder %s19, 1
      %s199 = scalar_select %p198, %s19, 1
      %s200 = scalar_lea.vmem %s2, %s199
      %p201 = scmp.lt.s32.totalorder %s19, 1
      %s202 = scalar_select %p201, %s19, 1
      %s203 = scalar_lea.vmem %s3, %s202
      %v205 = vld [vmem:[%s194] sm:$0xf]
      %v206 = vld [vmem:[%s194 + $0x4] sm:$0xf]
      %v207 = vld [vmem:[%s194 + $0x8] sm:$0xf]
      %v208 = vld [vmem:[%s194 + $0xc] sm:$0xf]
      %v209 = vld [vmem:[%s194 + $0x10] sm:$0xf]
      %v210 = vld [vmem:[%s194 + $0x14] sm:$0xf]
      %v211 = vld [vmem:[%s194 + $0x18] sm:$0xf]
      %v212 = vld [vmem:[%s194 + $0x1c] sm:$0xf]
      %v213 = vld [vmem:[%s194 + $0x20] sm:$0xf]
      %v214 = vld [vmem:[%s194 + $0x24] sm:$0xf]
      %v215 = vld [vmem:[%s194 + $0x28] sm:$0xf]
      %v216 = vld [vmem:[%s194 + $0x2c] sm:$0xf]
      %v217 = vld [vmem:[%s194 + $0x30] sm:$0xf]
      %v218 = vld [vmem:[%s194 + $0x34] sm:$0xf]
      %v219 = vld [vmem:[%s194 + $0x38] sm:$0xf]
      %v220 = vld [vmem:[%s194 + $0x3c] sm:$0xf]
      %v221 = vld [vmem:[%s1] sm:$0xf]
      %v222 = vld [vmem:[%s1 + $0x4] sm:$0xf]
      %v223 = vld [vmem:[%s1 + $0x8] sm:$0xf]
      %v224 = vld [vmem:[%s1 + $0xc] sm:$0xf]
      %v225 = vld [vmem:[%s1 + $0x10] sm:$0xf]
      %v242 = vunpack.c.l.b16 %v205
      %v243 = vunpack.c.l.b16 %v206
      %v244 = vunpack.c.l.b16 %v207
      %v245 = vunpack.c.l.b16 %v208
      %v246 = vunpack.c.l.b16 %v209
      %v247 = vunpack.c.l.b16 %v210
      %v248 = vunpack.c.l.b16 %v211
      %v249 = vunpack.c.l.b16 %v212
      %v250 = vunpack.c.l.b16 %v213
      %v251 = vunpack.c.l.b16 %v214
      %v252 = vunpack.c.l.b16 %v215
      %v253 = vunpack.c.l.b16 %v216
      %v254 = vunpack.c.l.b16 %v217
      %v255 = vunpack.c.l.b16 %v218
      %v256 = vunpack.c.l.b16 %v219
      %v257 = vunpack.c.l.b16 %v220
      %v258 = vpack.c.b16 %v243, %v242
      %v259 = vpack.c.b16 %v245, %v244
      %v260 = vpack.c.b16 %v247, %v246
      %v261 = vpack.c.b16 %v249, %v248
      %v262 = vpack.c.b16 %v251, %v250
      %v263 = vpack.c.b16 %v253, %v252
      %v264 = vpack.c.b16 %v255, %v254
      %v265 = vpack.c.b16 %v257, %v256
      %v271 = vunpack.c.l.b16 %v221
      %v272 = vunpack.c.l.b16 %v222
      %v273 = vunpack.c.l.b16 %v223
      %v274 = vunpack.c.l.b16 %v224
      %v275 = vunpack.c.l.b16 %v225
      %v276 = vpack.c.b16 %v272, %v271
      %v277 = vpack.c.b16 %v274, %v273
      %v278 = vpack.c.b16 %v275, %v275
      %vm281 = vcmask 326656
      %v283 = vsel %vm281, %v258, 0
      %v286 = vsel %vm281, %v259, 0
      %v289 = vsel %vm281, %v260, 0
      %v292 = vsel %vm281, %v261, 0
      %v295 = vsel %vm281, %v262, 0
      %v298 = vsel %vm281, %v263, 0
      %v301 = vsel %vm281, %v264, 0
      %v304 = vsel %vm281, %v265, 0
      %vm306 = vcmask 1043456
      %v308 = vsel %vm306, %v278, 0
      %310 = vmatprep.subr.bf16.mxu0 0
      %311 = vmatpush1.bf16.msra.mxu0 %v276
      %312 = vmatprep.subr.bf16.mxu0 0
      %313 = vmatpush1.bf16.msra.mxu0 %v277
      %314 = vmatprep.subr.bf16.mxu0 0
      %315 = vmatpush1.bf16.msra.mxu0 %v308
      %316 = vmatprep.subr.bf16.mxu0 0
      %317 = vmatpush1.bf16.msra.mxu0 0
      %318 = vmatprep.subr.bf16.mxu0 0
      %319 = vmatpush1.bf16.msra.mxu0 0
      %320 = vmatprep.subr.bf16.mxu0 0
      %321 = vmatpush1.bf16.msra.mxu0 0
      %322 = vmatprep.subr.bf16.mxu0 0
      %323 = vmatpush1.bf16.msra.mxu0 0
      %324 = vmatprep.subr.bf16.mxu0 0
      %325 = vmatpush1.bf16.msra.mxu0 0
      %326 = vmatprep.subr.bf16.mxu0 0
      %327 = vmatpush1.bf16.msra.mxu0 0
      %328 = vmatprep.subr.bf16.mxu0 0
      %329 = vmatpush1.bf16.msra.mxu0 0
      %330 = vmatprep.subr.bf16.mxu0 0
      %331 = vmatpush1.bf16.msra.mxu0 0
      %332 = vmatprep.subr.bf16.mxu0 0
      %333 = vmatpush1.bf16.msra.mxu0 0
      %334 = vmatprep.subr.bf16.mxu0 0
      %335 = vmatpush1.bf16.msra.mxu0 0
      %336 = vmatprep.subr.bf16.mxu0 0
      %337 = vmatpush1.bf16.msra.mxu0 0
      %338 = vmatprep.subr.bf16.mxu0 0
      %339 = vmatpush1.bf16.msra.mxu0 0
      %340 = vmatprep.subr.bf16.mxu0 0
      %341 = vmatpush1.bf16.msra.mxu0 0
      %342 = vmatprep.mubr.bf16.mxu0 0
      %343 = vmatmul.mubr.bf16.gmra.mrb[0].mxu0 %v283
      %v344 = vpop.f32.mrb[0].mxu0
      %v345 = vadd.f32 0.0, %v344
      %v346 = vpop.f32.mrb[0].mxu0
      %v347 = vpop.f32.mrb[0].mxu0
      %v348 = vadd.f32 0.0, %v347
      %v349 = vpop.f32.mrb[0].mxu0
      %350 = vmatprep.mubr.bf16.mxu0 0
      %351 = vmatmul.mubr.bf16.gmra.mrb[0].mxu0 %v286
      %v352 = vpop.f32.mrb[0].mxu0
      %v353 = vadd.f32 0.0, %v352
      %v354 = vpop.f32.mrb[0].mxu0
      %v355 = vpop.f32.mrb[0].mxu0
      %v356 = vadd.f32 0.0, %v355
      %v357 = vpop.f32.mrb[0].mxu0
      %358 = vmatprep.mubr.bf16.mxu0 0
      %359 = vmatmul.mubr.bf16.gmra.mrb[0].mxu0 %v289
      %v360 = vpop.f32.mrb[0].mxu0
      %v361 = vadd.f32 0.0, %v360
      %v362 = vpop.f32.mrb[0].mxu0
      %v363 = vpop.f32.mrb[0].mxu0
      %v364 = vadd.f32 0.0, %v363
      %v365 = vpop.f32.mrb[0].mxu0
      %366 = vmatprep.mubr.bf16.mxu0 0
      %367 = vmatmul.mubr.bf16.gmra.mrb[0].mxu0 %v292
      %v368 = vpop.f32.mrb[0].mxu0
      %v369 = vadd.f32 0.0, %v368
      %v370 = vpop.f32.mrb[0].mxu0
      %v371 = vpop.f32.mrb[0].mxu0
      %v372 = vadd.f32 0.0, %v371
      %v373 = vpop.f32.mrb[0].mxu0
      %374 = vmatprep.mubr.bf16.mxu0 0
      %375 = vmatmul.mubr.bf16.gmra.mrb[0].mxu0 %v295
      %v376 = vpop.f32.mrb[0].mxu0
      %v377 = vadd.f32 0.0, %v376
      %v378 = vpop.f32.mrb[0].mxu0
      %v379 = vpop.f32.mrb[0].mxu0
      %v380 = vadd.f32 0.0, %v379
      %v381 = vpop.f32.mrb[0].mxu0
      %382 = vmatprep.mubr.bf16.mxu0 0
      %383 = vmatmul.mubr.bf16.gmra.mrb[0].mxu0 %v298
      %v384 = vpop.f32.mrb[0].mxu0
      %v385 = vadd.f32 0.0, %v384
      %v386 = vpop.f32.mrb[0].mxu0
      %v387 = vpop.f32.mrb[0].mxu0
      %v388 = vadd.f32 0.0, %v387
      %v389 = vpop.f32.mrb[0].mxu0
      %390 = vmatprep.mubr.bf16.mxu0 0
      %391 = vmatmul.mubr.bf16.gmra.mrb[0].mxu0 %v301
      %v392 = vpop.f32.mrb[0].mxu0
      %v393 = vadd.f32 0.0, %v392
      %v394 = vpop.f32.mrb[0].mxu0
      %v395 = vpop.f32.mrb[0].mxu0
      %v396 = vadd.f32 0.0, %v395
      %v397 = vpop.f32.mrb[0].mxu0
      %398 = vmatprep.mubr.bf16.mxu0 0
      %399 = vmatmul.mubr.bf16.gmra.mrb[0].mxu0 %v304
      %v400 = vpop.f32.mrb[0].mxu0
      %v401 = vadd.f32 0.0, %v400
      %v402 = vpop.f32.mrb[0].mxu0
      %v403 = vpop.f32.mrb[0].mxu0
      %v404 = vadd.f32 0.0, %v403
      %v405 = vpop.f32.mrb[0].mxu0
      %406 = vdwg.mxu0
      %p407 = scmp.eq.s32.totalorder %s20, 0
      // Predicated region
      $region29: #{convolution_forward.2} parent=27 // pred_check
        %p408 = pneg %p407
      $region30: #{convolution_forward.2} parent=27 // pred_check_branch
        %410 = sbr.rel (%p408) target = $region32
      $region31: #{convolution_forward.2} parent=27 // pred_region
        %vm411 = vcmask 516096
        %412 = vst.msk [vmem:[%s200] sm:$0x1] %vm411, 0.0
        %413 = vst.msk [vmem:[%s203] sm:$0x1] %vm411, 0.0
      $region32: #{convolution_forward.2} parent=27 // pred_fallthru
        _
      %v414 = vld [vmem:[%s200] sm:$0x1]
      %vm415 = vcmask 523264
      %v416 = vsel %vm415, %v345, 0.0
      %v417 = vsel %vm415, %v348, 0.0
      %v418 = vadd.f32 %v416, %v417
      %v419 = vsel %vm415, %v353, 0.0
      %v420 = vadd.f32 %v418, %v419
      %v421 = vsel %vm415, %v356, 0.0
      %v422 = vadd.f32 %v420, %v421
      %v423 = vsel %vm415, %v361, 0.0
      %v424 = vadd.f32 %v422, %v423
      %v425 = vsel %vm415, %v364, 0.0
      %v426 = vadd.f32 %v424, %v425
      %v427 = vsel %vm415, %v369, 0.0
      %v428 = vadd.f32 %v426, %v427
      %v429 = vsel %vm415, %v372, 0.0
      %v430 = vadd.f32 %v428, %v429
      %v431 = vsel %vm415, %v377, 0.0
      %v432 = vadd.f32 %v430, %v431
      %v433 = vsel %vm415, %v380, 0.0
      %v434 = vadd.f32 %v432, %v433
      %v435 = vsel %vm415, %v385, 0.0
      %v436 = vadd.f32 %v434, %v435
      %v437 = vsel %vm415, %v388, 0.0
      %v438 = vadd.f32 %v436, %v437
      %v439 = vsel %vm415, %v393, 0.0
      %v440 = vadd.f32 %v438, %v439
      %v441 = vsel %vm415, %v396, 0.0
      %v442 = vadd.f32 %v440, %v441
      %v443 = vsel %vm415, %v401, 0.0
      %v444 = vadd.f32 %v442, %v443
      %v445 = vsel %vm415, %v404, 0.0
      %v446 = vadd.f32 %v444, %v445
      %v447 = vrot.slane %v446, 4
      %v448 = vadd.f32 %v446, %v447
      %v449 = vrot.slane %v448, 2
      %v450 = vadd.f32 %v448, %v449
      %v451 = vrot.slane %v450, 1
      %v452 = vadd.f32 %v450, %v451
      %v453 = vadd.f32 %v414, %v452
      %vm454 = vcmask 516096
      %455 = vst.msk [vmem:[%s200] sm:$0x1] %vm454, %v453
      %v456 = vld [vmem:[%s203] sm:$0x1]
      %v457 = vmul.f32 %v345, %v345
      %v458 = vmul.f32 %v348, %v348
      %v459 = vmul.f32 %v353, %v353
      %v460 = vmul.f32 %v356, %v356
      %v461 = vmul.f32 %v361, %v361
      %v462 = vmul.f32 %v364, %v364
      %v463 = vmul.f32 %v369, %v369
      %v464 = vmul.f32 %v372, %v372
      %v465 = vmul.f32 %v377, %v377
      %v466 = vmul.f32 %v380, %v380
      %v467 = vmul.f32 %v385, %v385
      %v468 = vmul.f32 %v388, %v388
      %v469 = vmul.f32 %v393, %v393
      %v470 = vmul.f32 %v396, %v396
      %v471 = vmul.f32 %v401, %v401
      %v472 = vmul.f32 %v404, %v404
      %v473 = vsel %vm415, %v457, 0.0
      %v474 = vsel %vm415, %v458, 0.0
      %v475 = vadd.f32 %v473, %v474
      %v476 = vsel %vm415, %v459, 0.0
      %v477 = vadd.f32 %v475, %v476
      %v478 = vsel %vm415, %v460, 0.0
      %v479 = vadd.f32 %v477, %v478
      %v480 = vsel %vm415, %v461, 0.0
      %v481 = vadd.f32 %v479, %v480
      %v482 = vsel %vm415, %v462, 0.0
      %v483 = vadd.f32 %v481, %v482
      %v484 = vsel %vm415, %v463, 0.0
      %v485 = vadd.f32 %v483, %v484
      %v486 = vsel %vm415, %v464, 0.0
      %v487 = vadd.f32 %v485, %v486
      %v488 = vsel %vm415, %v465, 0.0
      %v489 = vadd.f32 %v487, %v488
      %v490 = vsel %vm415, %v466, 0.0
      %v491 = vadd.f32 %v489, %v490
      %v492 = vsel %vm415, %v467, 0.0
      %v493 = vadd.f32 %v491, %v492
      %v494 = vsel %vm415, %v468, 0.0
      %v495 = vadd.f32 %v493, %v494
      %v496 = vsel %vm415, %v469, 0.0
      %v497 = vadd.f32 %v495, %v496
      %v498 = vsel %vm415, %v470, 0.0
      %v499 = vadd.f32 %v497, %v498
      %v500 = vsel %vm415, %v471, 0.0
      %v501 = vadd.f32 %v499, %v500
      %v502 = vsel %vm415, %v472, 0.0
      %v503 = vadd.f32 %v501, %v502
      %v504 = vrot.slane %v503, 4
      %v505 = vadd.f32 %v503, %v504
      %v506 = vrot.slane %v505, 2
      %v507 = vadd.f32 %v505, %v506
      %v508 = vrot.slane %v507, 1
      %v509 = vadd.f32 %v507, %v508
      %v510 = vadd.f32 %v456, %v509
      %511 = vst.msk [vmem:[%s203] sm:$0x1] %vm454, %v510
      %p512 = scmp.lt.s32.totalorder %s19, 1
      %s513 = scalar_select %p512, %s19, 1
      %s514 = scalar_lea.vmem %s2, %s513
      %p515 = scmp.lt.s32.totalorder %s19, 1
      %s516 = scalar_select %p515, %s19, 1
      %s517 = scalar_lea.vmem %s3, %s516
      // Predicated region
      $region33: #{convolution_forward.2} parent=27 // pred_check
        %p518 = pneg %p96
      $region34: #{convolution_forward.2} parent=27 // pred_check_branch
        %520 = sbr.rel (%p518) target = $region36
      $region35: #{convolution_forward.2} parent=27 // pred_region
        _
      $region36: #{convolution_forward.2} parent=27 // pred_fallthru
        _
      // Predicated region
      $region37: #{convolution_forward.2} parent=27 // pred_check
        %p521 = pneg %p122
      $region38: #{convolution_forward.2} parent=27 // pred_check_branch
        %523 = sbr.rel (%p521) target = $region40
      $region39: #{convolution_forward.2} parent=27 // pred_region
        _
      $region40: #{convolution_forward.2} parent=27 // pred_fallthru
        _
    $region28: #{convolution_forward.2} parent=5 // pred_fallthru
      _
    %p524 = scmp.le.s32.totalorder 2, %s10
    // Predicated region
    $region41: #{convolution_forward.2} parent=5 // pred_check
      %p525 = pneg %p524
    $region42: #{convolution_forward.2} parent=5 // pred_check_branch
      %527 = sbr.rel (%p525) target = $region44
    $region43: #{convolution_forward.2} parent=5 // pred_region
      %s528 = ssub.s32 %s10, 2
      // Predicated region
      $region45: #{convolution_forward.2} parent=43 // pred_check
        %p529 = pneg %p102
      $region46: #{convolution_forward.2} parent=43 // pred_check_branch
        %531 = sbr.rel (%p529) target = $region48
      $region47: #{convolution_forward.2} parent=43 // pred_region
        %p532 = scmp.lt.s32.totalorder %s21, 1
        %s533 = scalar_select %p532, %s21, 1
        %s534 = scalar_lea.vmem %s2, %s533
      $region48: #{convolution_forward.2} parent=43 // pred_fallthru
        _
      // Predicated region
      $region49: #{convolution_forward.2} parent=43 // pred_check
        %p535 = pneg %p128
      $region50: #{convolution_forward.2} parent=43 // pred_check_branch
        %537 = sbr.rel (%p535) target = $region52
      $region51: #{convolution_forward.2} parent=43 // pred_region
        %p538 = scmp.lt.s32.totalorder %s21, 1
        %s539 = scalar_select %p538, %s21, 1
        %s540 = scalar_lea.vmem %s3, %s539
      $region52: #{convolution_forward.2} parent=43 // pred_fallthru
        _
    $region44: #{convolution_forward.2} parent=5 // pred_fallthru
      _
  $region6: #{convolution_forward.2} parent=0 // loop_footer
    %s14 = sadd.s32 1, %s10
  $region7: #{convolution_forward.2} parent=0 // loop_footer_branch
    %9 = sbr.rel target = $region3
  $region8: #{convolution_forward.2} parent=0 // loop_exit
    _

// kernel: convolution_forward.3
$region0: #{convolution_forward.3}
  #allocation0 [shape = 'u32[]', space=smem, size = 0x4, offset = 0x4, fixed_abs, tag = 'smem constant byte address 0x4 - core index']
  #allocation1 [shape = 'u32[144,128]{1,0:T(1,128)}', space=vmem, size = 0x12000, scoped, tag = 'internal scratch']
  %s0 = inlined_call_operand.vmem [shape: bf16[512,40], index: 0, kind: input, shape index: {}]
  %s1 = inlined_call_operand.vmem [shape: bf16[40,64], index: 1, kind: input, shape index: {}]
  %s2 = inlined_call_operand.vmem [shape: f32[2,64], index: 2, kind: input, shape index: {}]
  %s3 = inlined_call_operand.vmem [shape: f32[512,64], index: 3, kind: output, shape index: {}]
  %s4 = sld [smem:[#allocation0]]
  $region45: #{convolution_forward.3} parent=0
    _
  %s6 = ssub.s32 1, %s4
  %s7 = scalar_select 0, %s6, %s4
  loop: start=0, step=1, limit=6
  $region2: #{convolution_forward.3} parent=0 // loop_pre_header
    _
  $region3: #{convolution_forward.3} parent=0 // loop_header
    %s9 = sphi 0, %s13
    %p10 = scmp.ge.s32.totalorder %s9, 6
    %s19 = sphi 0, %s21
    %s22 = sphi 0, %s19
    %s23 = sphi 0, %s22
    %s39 = sphi 0, %s23
    %s43 = sphi 0, %s43
    %s45 = sphi 0, %s43
    %s46 = sphi 0, %s45
    %s60 = sphi 0, %s46
    %s64 = sphi 0, %s64
    %s66 = sphi 0, %s64
    %s67 = sphi 0, %s66
    %s81 = sphi 0, %s67
    %s87 = sphi 0, %s89
    %s90 = sphi 0, %s87
    %s91 = sphi 0, %s90
    %s107 = sphi 0, %s91
  $region4: #{convolution_forward.3} parent=0 // loop_header_branch
    %12 = sbr.rel (%p10) target = $region8
  $region5: #{convolution_forward.3} parent=0 // loop_body
    %s14 = ssub.s32 %s9, 1
    %s15 = ssub.s32 %s9, 2
    %s16 = sadd.s32 %s9, 1
    %s17 = ssub.s32 %s9, %s16
    %p18 = scmp.eq.s32.totalorder %s17, 0
    %s20 = sadd.s32 %s19, 1
    %s21 = scalar_select %p18, %s19, %s20
    %p24 = pneg %p18
    %p25 = scmp.eq.s32.totalorder %s9, 3
    %p26 = por %p24, %p25
    %p27 = scmp.ne.s32.totalorder %s19, %s22
    %p28 = scmp.eq.s32.totalorder %s9, 0
    %p29 = por %p27, %p28
    %p30 = scmp.ne.s32.totalorder %s19, %s22
    %p31 = scmp.eq.s32.totalorder %s14, 3
    %p32 = por %p30, %p31
    %p33 = scmp.ne.s32.totalorder %s22, %s23
    %p34 = scmp.eq.s32.totalorder %s14, 0
    %p35 = por %p33, %p34
    %p36 = scmp.ne.s32.totalorder %s22, %s23
    %p37 = scmp.eq.s32.totalorder %s15, 3
    %p38 = por %p36, %p37
    %p40 = scmp.ne.s32.totalorder %s23, %s39
    %p41 = scmp.eq.s32.totalorder %s15, 0
    %p42 = por %p40, %p41
    %s44 = sadd.s32 %s43, 1
    %p47 = scmp.eq.s32.totalorder %s9, 3
    %p48 = scmp.ne.s32.totalorder %s43, %s45
    %p49 = scmp.eq.s32.totalorder %s9, 0
    %p50 = por %p48, %p49
    %p51 = scmp.ne.s32.totalorder %s43, %s45
    %p52 = scmp.eq.s32.totalorder %s14, 3
    %p53 = por %p51, %p52
    %p54 = scmp.ne.s32.totalorder %s45, %s46
    %p55 = scmp.eq.s32.totalorder %s14, 0
    %p56 = por %p54, %p55
    %p57 = scmp.ne.s32.totalorder %s45, %s46
    %p58 = scmp.eq.s32.totalorder %s15, 3
    %p59 = por %p57, %p58
    %p61 = scmp.ne.s32.totalorder %s46, %s60
    %p62 = scmp.eq.s32.totalorder %s15, 0
    %p63 = por %p61, %p62
    %s65 = sadd.s32 %s64, 1
    %p68 = scmp.eq.s32.totalorder %s9, 3
    %p69 = scmp.ne.s32.totalorder %s64, %s66
    %p70 = scmp.eq.s32.totalorder %s9, 0
    %p71 = por %p69, %p70
    %p72 = scmp.ne.s32.totalorder %s64, %s66
    %p73 = scmp.eq.s32.totalorder %s14, 3
    %p74 = por %p72, %p73
    %p75 = scmp.ne.s32.totalorder %s66, %s67
    %p76 = scmp.eq.s32.totalorder %s14, 0
    %p77 = por %p75, %p76
    %p78 = scmp.ne.s32.totalorder %s66, %s67
    %p79 = scmp.eq.s32.totalorder %s15, 3
    %p80 = por %p78, %p79
    %p82 = scmp.ne.s32.totalorder %s67, %s81
    %p83 = scmp.eq.s32.totalorder %s15, 0
    %p84 = por %p82, %p83
    %s85 = ssub.s32 %s9, %s16
    %p86 = scmp.eq.s32.totalorder %s85, 0
    %s88 = sadd.s32 %s87, 1
    %s89 = scalar_select %p86, %s87, %s88
    %p92 = pneg %p86
    %p93 = scmp.eq.s32.totalorder %s9, 3
    %p94 = por %p92, %p93
    %p95 = scmp.ne.s32.totalorder %s87, %s90
    %p96 = scmp.eq.s32.totalorder %s9, 0
    %p97 = por %p95, %p96
    %p98 = scmp.ne.s32.totalorder %s87, %s90
    %p99 = scmp.eq.s32.totalorder %s14, 3
    %p100 = por %p98, %p99
    %p101 = scmp.ne.s32.totalorder %s90, %s91
    %p102 = scmp.eq.s32.totalorder %s14, 0
    %p103 = por %p101, %p102
    %p104 = scmp.ne.s32.totalorder %s90, %s91
    %p105 = scmp.eq.s32.totalorder %s15, 3
    %p106 = por %p104, %p105
    %p108 = scmp.ne.s32.totalorder %s91, %s107
    %p109 = scmp.eq.s32.totalorder %s15, 0
    %p110 = por %p108, %p109
    %p111 = scmp.le.s32.totalorder 1, %s9
    %p112 = scmp.lt.s32.totalorder %s9, 5
    %p113 = pnand %p111, %p112
    %p114 = pneg %p113
    // Predicated region
    $region9: #{convolution_forward.3} parent=5 // pred_check
      _
    $region10: #{convolution_forward.3} parent=5 // pred_check_branch
      %116 = sbr.rel (%p113) target = $region12
    $region11: #{convolution_forward.3} parent=5 // pred_region
      %s117 = ssub.s32 %s9, 1
      // Predicated region
      $region13: #{convolution_forward.3} parent=11 // pred_check
        %p118 = pneg %p56
      $region14: #{convolution_forward.3} parent=11 // pred_check_branch
        %120 = sbr.rel (%p118) target = $region16
      $region15: #{convolution_forward.3} parent=11 // pred_region
        _
      $region16: #{convolution_forward.3} parent=11 // pred_fallthru
        _
      // Predicated region
      $region17: #{convolution_forward.3} parent=11 // pred_check
        %p121 = pneg %p77
      $region18: #{convolution_forward.3} parent=11 // pred_check_branch
        %123 = sbr.rel (%p121) target = $region20
      $region19: #{convolution_forward.3} parent=11 // pred_region
        _
      $region20: #{convolution_forward.3} parent=11 // pred_fallthru
        _
    $region12: #{convolution_forward.3} parent=5 // pred_fallthru
      _
    %p124 = scmp.lt.s32.totalorder %s9, 4
    // Predicated region
    $region21: #{convolution_forward.3} parent=5 // pred_check
      %p125 = pneg %p124
    $region22: #{convolution_forward.3} parent=5 // pred_check_branch
      %127 = sbr.rel (%p125) target = $region24
    $region23: #{convolution_forward.3} parent=5 // pred_region
      // Predicated region
      $region25: #{convolution_forward.3} parent=23 // pred_check
        %p128 = pneg %p29
      $region26: #{convolution_forward.3} parent=23 // pred_check_branch
        %130 = sbr.rel (%p128) target = $region28
      $region27: #{convolution_forward.3} parent=23 // pred_region
        %s131 = smul.u32 16, %s9
        %p132 = scmp.lt.s32.totalorder %s131, 63
        %s133 = scalar_select %p132, %s131, 63
        %s134 = smul.addr %s133, 4
        %s135 = scalar_lea.vmem %s0, %s134
        %s136 = smul.u32 16, %s9
      $region28: #{convolution_forward.3} parent=23 // pred_fallthru
        _
    $region24: #{convolution_forward.3} parent=5 // pred_fallthru
      _
    %p137 = scmp.le.s32.totalorder 1, %s9
    %p138 = scmp.lt.s32.totalorder %s9, 5
    %p139 = pnand %p137, %p138
    %p140 = pneg %p139
    // Predicated region
    $region29: #{convolution_forward.3} parent=5 // pred_check
      _
    $region30: #{convolution_forward.3} parent=5 // pred_check_branch
      %142 = sbr.rel (%p139) target = $region32
    $region31: #{convolution_forward.3} parent=5 // pred_region
      %s143 = ssub.s32 %s9, 1
      %s144 = smul.u32 16, %s14
      %p145 = scmp.lt.s32.totalorder %s144, 63
      %s146 = scalar_select %p145, %s144, 63
      %s147 = smul.addr %s146, 4
      %s148 = scalar_lea.vmem %s0, %s147
      %p149 = pneg %p35
      %p150 = pneg %p32
      %p151 = pneg %p56
      %p152 = pneg %p53
      %p153 = pneg %p77
      %p154 = pneg %p74
      %p155 = pneg %p103
      %p156 = pneg %p100
      %s157 = smul.u32 16, %s14
      %p158 = scmp.lt.s32.totalorder %s157, 63
      %s159 = scalar_select %p158, %s157, 63
      %s160 = smul.addr %s159, 8
      %s161 = scalar_lea.vmem %s3, %s160
      %s162 = smul.u32 16, %s14
      %p163 = scmp.lt.s32.totalorder %s162, 63
      %s164 = scalar_select %p163, %s162, 63
      %s165 = smul.addr %s164, 4
      %s166 = scalar_lea.vmem %s0, %s165
      %s167 = smul.u32 16, %s14
      %s168 = smul.u32 16, %s14
      %p169 = scmp.lt.s32.totalorder %s168, 63
      %s170 = scalar_select %p169, %s168, 63
      %s171 = smul.addr %s170, 8
      %s172 = scalar_lea.vmem %s3, %s171
      %s173 = smul.u32 16, %s14
      %v175 = vld [vmem:[%s166] sm:$0xf]
      %v176 = vld [vmem:[%s166 + $0x4] sm:$0xf]
      %v177 = vld [vmem:[%s166 + $0x8] sm:$0xf]
      %v178 = vld [vmem:[%s166 + $0xc] sm:$0xf]
      %v179 = vld [vmem:[%s166 + $0x10] sm:$0xf]
      %v180 = vld [vmem:[%s166 + $0x14] sm:$0xf]
      %v181 = vld [vmem:[%s166 + $0x18] sm:$0xf]
      %v182 = vld [vmem:[%s166 + $0x1c] sm:$0xf]
      %v183 = vld [vmem:[%s166 + $0x20] sm:$0xf]
      %v184 = vld [vmem:[%s166 + $0x24] sm:$0xf]
      %v185 = vld [vmem:[%s166 + $0x28] sm:$0xf]
      %v186 = vld [vmem:[%s166 + $0x2c] sm:$0xf]
      %v187 = vld [vmem:[%s166 + $0x30] sm:$0xf]
      %v188 = vld [vmem:[%s166 + $0x34] sm:$0xf]
      %v189 = vld [vmem:[%s166 + $0x38] sm:$0xf]
      %v190 = vld [vmem:[%s166 + $0x3c] sm:$0xf]
      %v191 = vld [vmem:[%s1] sm:$0xf]
      %v192 = vld [vmem:[%s1 + $0x4] sm:$0xf]
      %v193 = vld [vmem:[%s1 + $0x8] sm:$0xf]
      %v194 = vld [vmem:[%s1 + $0xc] sm:$0xf]
      %v195 = vld [vmem:[%s1 + $0x10] sm:$0xf]
      %v212 = vunpack.c.l.b16 %v175
      %v213 = vunpack.c.l.b16 %v176
      %v214 = vunpack.c.l.b16 %v177
      %v215 = vunpack.c.l.b16 %v178
      %v216 = vunpack.c.l.b16 %v179
      %v217 = vunpack.c.l.b16 %v180
      %v218 = vunpack.c.l.b16 %v181
      %v219 = vunpack.c.l.b16 %v182
      %v220 = vunpack.c.l.b16 %v183
      %v221 = vunpack.c.l.b16 %v184
      %v222 = vunpack.c.l.b16 %v185
      %v223 = vunpack.c.l.b16 %v186
      %v224 = vunpack.c.l.b16 %v187
      %v225 = vunpack.c.l.b16 %v188
      %v226 = vunpack.c.l.b16 %v189
      %v227 = vunpack.c.l.b16 %v190
      %v228 = vpack.c.b16 %v213, %v212
      %v229 = vpack.c.b16 %v215, %v214
      %v230 = vpack.c.b16 %v217, %v216
      %v231 = vpack.c.b16 %v219, %v218
      %v232 = vpack.c.b16 %v221, %v220
      %v233 = vpack.c.b16 %v223, %v222
      %v234 = vpack.c.b16 %v225, %v224
      %v235 = vpack.c.b16 %v227, %v226
      %v241 = vunpack.c.l.b16 %v191
      %v242 = vunpack.c.l.b16 %v192
      %v243 = vunpack.c.l.b16 %v193
      %v244 = vunpack.c.l.b16 %v194
      %v245 = vunpack.c.l.b16 %v195
      %v246 = vpack.c.b16 %v242, %v241
      %v247 = vpack.c.b16 %v244, %v243
      %v248 = vpack.c.b16 %v245, %v245
      %vm251 = vcmask 326656
      %v253 = vsel %vm251, %v228, 0
      %v256 = vsel %vm251, %v229, 0
      %v259 = vsel %vm251, %v230, 0
      %v262 = vsel %vm251, %v231, 0
      %v265 = vsel %vm251, %v232, 0
      %v268 = vsel %vm251, %v233, 0
      %v271 = vsel %vm251, %v234, 0
      %v274 = vsel %vm251, %v235, 0
      %vm276 = vcmask 1043456
      %v278 = vsel %vm276, %v248, 0
      %280 = vmatprep.subr.bf16.mxu0 0
      %281 = vmatpush1.bf16.msra.mxu0 %v246
      %282 = vmatprep.subr.bf16.mxu0 0
      %283 = vmatpush1.bf16.msra.mxu0 %v247
      %284 = vmatprep.subr.bf16.mxu0 0
      %285 = vmatpush1.bf16.msra.mxu0 %v278
      %286 = vmatprep.subr.bf16.mxu0 0
      %287 = vmatpush1.bf16.msra.mxu0 0
      %288 = vmatprep.subr.bf16.mxu0 0
      %289 = vmatpush1.bf16.msra.mxu0 0
      %290 = vmatprep.subr.bf16.mxu0 0
      %291 = vmatpush1.bf16.msra.mxu0 0
      %292 = vmatprep.subr.bf16.mxu0 0
      %293 = vmatpush1.bf16.msra.mxu0 0
      %294 = vmatprep.subr.bf16.mxu0 0
      %295 = vmatpush1.bf16.msra.mxu0 0
      %296 = vmatprep.subr.bf16.mxu0 0
      %297 = vmatpush1.bf16.msra.mxu0 0
      %298 = vmatprep.subr.bf16.mxu0 0
      %299 = vmatpush1.bf16.msra.mxu0 0
      %300 = vmatprep.subr.bf16.mxu0 0
      %301 = vmatpush1.bf16.msra.mxu0 0
      %302 = vmatprep.subr.bf16.mxu0 0
      %303 = vmatpush1.bf16.msra.mxu0 0
      %304 = vmatprep.subr.bf16.mxu0 0
      %305 = vmatpush1.bf16.msra.mxu0 0
      %306 = vmatprep.subr.bf16.mxu0 0
      %307 = vmatpush1.bf16.msra.mxu0 0
      %308 = vmatprep.subr.bf16.mxu0 0
      %309 = vmatpush1.bf16.msra.mxu0 0
      %310 = vmatprep.subr.bf16.mxu0 0
      %311 = vmatpush1.bf16.msra.mxu0 0
      %312 = vmatprep.mubr.bf16.mxu0 0
      %313 = vmatmul.mubr.bf16.gmra.mrb[0].mxu0 %v253
      %v314 = vpop.f32.mrb[0].mxu0
      %v315 = vadd.f32 0.0, %v314
      %v316 = vpop.f32.mrb[0].mxu0
      %v317 = vpop.f32.mrb[0].mxu0
      %v318 = vadd.f32 0.0, %v317
      %v319 = vpop.f32.mrb[0].mxu0
      %320 = vmatprep.mubr.bf16.mxu0 0
      %321 = vmatmul.mubr.bf16.gmra.mrb[0].mxu0 %v256
      %v322 = vpop.f32.mrb[0].mxu0
      %v323 = vadd.f32 0.0, %v322
      %v324 = vpop.f32.mrb[0].mxu0
      %v325 = vpop.f32.mrb[0].mxu0
      %v326 = vadd.f32 0.0, %v325
      %v327 = vpop.f32.mrb[0].mxu0
      %328 = vmatprep.mubr.bf16.mxu0 0
      %329 = vmatmul.mubr.bf16.gmra.mrb[0].mxu0 %v259
      %v330 = vpop.f32.mrb[0].mxu0
      %v331 = vadd.f32 0.0, %v330
      %v332 = vpop.f32.mrb[0].mxu0
      %v333 = vpop.f32.mrb[0].mxu0
      %v334 = vadd.f32 0.0, %v333
      %v335 = vpop.f32.mrb[0].mxu0
      %336 = vmatprep.mubr.bf16.mxu0 0
      %337 = vmatmul.mubr.bf16.gmra.mrb[0].mxu0 %v262
      %v338 = vpop.f32.mrb[0].mxu0
      %v339 = vadd.f32 0.0, %v338
      %v340 = vpop.f32.mrb[0].mxu0
      %v341 = vpop.f32.mrb[0].mxu0
      %v342 = vadd.f32 0.0, %v341
      %v343 = vpop.f32.mrb[0].mxu0
      %344 = vmatprep.mubr.bf16.mxu0 0
      %345 = vmatmul.mubr.bf16.gmra.mrb[0].mxu0 %v265
      %v346 = vpop.f32.mrb[0].mxu0
      %v347 = vadd.f32 0.0, %v346
      %v348 = vpop.f32.mrb[0].mxu0
      %v349 = vpop.f32.mrb[0].mxu0
      %v350 = vadd.f32 0.0, %v349
      %v351 = vpop.f32.mrb[0].mxu0
      %352 = vmatprep.mubr.bf16.mxu0 0
      %353 = vmatmul.mubr.bf16.gmra.mrb[0].mxu0 %v268
      %v354 = vpop.f32.mrb[0].mxu0
      %v355 = vadd.f32 0.0, %v354
      %v356 = vpop.f32.mrb[0].mxu0
      %v357 = vpop.f32.mrb[0].mxu0
      %v358 = vadd.f32 0.0, %v357
      %v359 = vpop.f32.mrb[0].mxu0
      %360 = vmatprep.mubr.bf16.mxu0 0
      %361 = vmatmul.mubr.bf16.gmra.mrb[0].mxu0 %v271
      %v362 = vpop.f32.mrb[0].mxu0
      %v363 = vadd.f32 0.0, %v362
      %v364 = vpop.f32.mrb[0].mxu0
      %v365 = vpop.f32.mrb[0].mxu0
      %v366 = vadd.f32 0.0, %v365
      %v367 = vpop.f32.mrb[0].mxu0
      %368 = vmatprep.mubr.bf16.mxu0 0
      %369 = vmatmul.mubr.bf16.gmra.mrb[0].mxu0 %v274
      %v370 = vpop.f32.mrb[0].mxu0
      %v371 = vadd.f32 0.0, %v370
      %v372 = vpop.f32.mrb[0].mxu0
      %v373 = vpop.f32.mrb[0].mxu0
      %v374 = vadd.f32 0.0, %v373
      %v375 = vpop.f32.mrb[0].mxu0
      %376 = vdwg.mxu0
      %v377 = vld [vmem:[%s2] sm:$0x3]
      %v378 = vlaneseq
      %v379 = vshrl.u32 %v378, 7
      %v380 = vsub.s32 0, %v379
      %v381 = vrot.slane %v377, %v380
      %v382 = vmul.f32 %v315, %v381
      %v383 = vmul.f32 %v318, %v381
      %v384 = vmul.f32 %v323, %v381
      %v385 = vmul.f32 %v326, %v381
      %v386 = vmul.f32 %v331, %v381
      %v387 = vmul.f32 %v334, %v381
      %v388 = vmul.f32 %v339, %v381
      %v389 = vmul.f32 %v342, %v381
      %v390 = vmul.f32 %v347, %v381
      %v391 = vmul.f32 %v350, %v381
      %v392 = vmul.f32 %v355, %v381
      %v393 = vmul.f32 %v358, %v381
      %v394 = vmul.f32 %v363, %v381
      %v395 = vmul.f32 %v366, %v381
      %v396 = vmul.f32 %v371, %v381
      %v397 = vmul.f32 %v374, %v381
      %v398 = vlaneseq
      %v399 = vshrl.u32 %v398, 7
      %v400 = vsub.s32 1, %v399
      %v401 = vrot.slane %v377, %v400
      %v402 = vadd.f32 %v382, %v401
      %v403 = vadd.f32 %v383, %v401
      %v404 = vadd.f32 %v384, %v401
      %v405 = vadd.f32 %v385, %v401
      %v406 = vadd.f32 %v386, %v401
      %v407 = vadd.f32 %v387, %v401
      %v408 = vadd.f32 %v388, %v401
      %v409 = vadd.f32 %v389, %v401
      %v410 = vadd.f32 %v390, %v401
      %v411 = vadd.f32 %v391, %v401
      %v412 = vadd.f32 %v392, %v401
      %v413 = vadd.f32 %v393, %v401
      %v414 = vadd.f32 %v394, %v401
      %v415 = vadd.f32 %v395, %v401
      %v416 = vadd.f32 %v396, %v401
      %v417 = vadd.f32 %v397, %v401
      %vm418 = vcmp.ge.f32.partialorder %v402, 0.0
      %vm419 = vcmp.ge.f32.partialorder %v403, 0.0
      %vm420 = vcmp.ge.f32.partialorder %v404, 0.0
      %vm421 = vcmp.ge.f32.partialorder %v405, 0.0
      %vm422 = vcmp.ge.f32.partialorder %v406, 0.0
      %vm423 = vcmp.ge.f32.partialorder %v407, 0.0
      %vm424 = vcmp.ge.f32.partialorder %v408, 0.0
      %vm425 = vcmp.ge.f32.partialorder %v409, 0.0
      %vm426 = vcmp.ge.f32.partialorder %v410, 0.0
      %vm427 = vcmp.ge.f32.partialorder %v411, 0.0
      %vm428 = vcmp.ge.f32.partialorder %v412, 0.0
      %vm429 = vcmp.ge.f32.partialorder %v413, 0.0
      %vm430 = vcmp.ge.f32.partialorder %v414, 0.0
      %vm431 = vcmp.ge.f32.partialorder %v415, 0.0
      %vm432 = vcmp.ge.f32.partialorder %v416, 0.0
      %vm433 = vcmp.ge.f32.partialorder %v417, 0.0
      %v434 = vmul.f32 %v402, 0.01
      %v435 = vmul.f32 %v403, 0.01
      %v436 = vmul.f32 %v404, 0.01
      %v437 = vmul.f32 %v405, 0.01
      %v438 = vmul.f32 %v406, 0.01
      %v439 = vmul.f32 %v407, 0.01
      %v440 = vmul.f32 %v408, 0.01
      %v441 = vmul.f32 %v409, 0.01
      %v442 = vmul.f32 %v410, 0.01
      %v443 = vmul.f32 %v411, 0.01
      %v444 = vmul.f32 %v412, 0.01
      %v445 = vmul.f32 %v413, 0.01
      %v446 = vmul.f32 %v414, 0.01
      %v447 = vmul.f32 %v415, 0.01
      %v448 = vmul.f32 %v416, 0.01
      %v449 = vmul.f32 %v417, 0.01
      %v450 = vsel %vm418, %v402, %v434
      %v451 = vsel %vm419, %v403, %v435
      %v452 = vsel %vm420, %v404, %v436
      %v453 = vsel %vm421, %v405, %v437
      %v454 = vsel %vm422, %v406, %v438
      %v455 = vsel %vm423, %v407, %v439
      %v456 = vsel %vm424, %v408, %v440
      %v457 = vsel %vm425, %v409, %v441
      %v458 = vsel %vm426, %v410, %v442
      %v459 = vsel %vm427, %v411, %v443
      %v460 = vsel %vm428, %v412, %v444
      %v461 = vsel %vm429, %v413, %v445
      %v462 = vsel %vm430, %v414, %v446
      %v463 = vsel %vm431, %v415, %v447
      %v464 = vsel %vm432, %v416, %v448
      %v465 = vsel %vm433, %v417, %v449
      %vm466 = vcmask 523264
      %467 = vst.msk [vmem:[%s172] sm:$0xff] %vm466, %v450
      %468 = vst.msk [vmem:[%s172 + $0x8] sm:$0xff] %vm466, %v451
      %469 = vst.msk [vmem:[%s172 + $0x10] sm:$0xff] %vm466, %v452
      %470 = vst.msk [vmem:[%s172 + $0x18] sm:$0xff] %vm466, %v453
      %471 = vst.msk [vmem:[%s172 + $0x20] sm:$0xff] %vm466, %v454
      %472 = vst.msk [vmem:[%s172 + $0x28] sm:$0xff] %vm466, %v455
      %473 = vst.msk [vmem:[%s172 + $0x30] sm:$0xff] %vm466, %v456
      %474 = vst.msk [vmem:[%s172 + $0x38] sm:$0xff] %vm466, %v457
      %475 = vst.msk [vmem:[%s172 + $0x40] sm:$0xff] %vm466, %v458
      %476 = vst.msk [vmem:[%s172 + $0x48] sm:$0xff] %vm466, %v459
      %477 = vst.msk [vmem:[%s172 + $0x50] sm:$0xff] %vm466, %v460
      %478 = vst.msk [vmem:[%s172 + $0x58] sm:$0xff] %vm466, %v461
      %479 = vst.msk [vmem:[%s172 + $0x60] sm:$0xff] %vm466, %v462
      %480 = vst.msk [vmem:[%s172 + $0x68] sm:$0xff] %vm466, %v463
      %481 = vst.msk [vmem:[%s172 + $0x70] sm:$0xff] %vm466, %v464
      %482 = vst.msk [vmem:[%s172 + $0x78] sm:$0xff] %vm466, %v465
      %s483 = smul.u32 16, %s14
      %p484 = scmp.lt.s32.totalorder %s483, 63
      %s485 = scalar_select %p484, %s483, 63
      %s486 = smul.addr %s485, 8
      %s487 = scalar_lea.vmem %s3, %s486
      // Predicated region
      $region33: #{convolution_forward.3} parent=31 // pred_check
        %p488 = pneg %p100
      $region34: #{convolution_forward.3} parent=31 // pred_check_branch
        %490 = sbr.rel (%p488) target = $region36
      $region35: #{convolution_forward.3} parent=31 // pred_region
        %s491 = smul.u32 16, %s14
      $region36: #{convolution_forward.3} parent=31 // pred_fallthru
        _
    $region32: #{convolution_forward.3} parent=5 // pred_fallthru
      _
    %p492 = scmp.le.s32.totalorder 2, %s9
    // Predicated region
    $region37: #{convolution_forward.3} parent=5 // pred_check
      %p493 = pneg %p492
    $region38: #{convolution_forward.3} parent=5 // pred_check_branch
      %495 = sbr.rel (%p493) target = $region40
    $region39: #{convolution_forward.3} parent=5 // pred_region
      %s496 = ssub.s32 %s9, 2
      // Predicated region
      $region41: #{convolution_forward.3} parent=39 // pred_check
        %p497 = pneg %p106
      $region42: #{convolution_forward.3} parent=39 // pred_check_branch
        %499 = sbr.rel (%p497) target = $region44
      $region43: #{convolution_forward.3} parent=39 // pred_region
        %s500 = smul.u32 16, %s15
        %p501 = scmp.lt.s32.totalorder %s500, 63
        %s502 = scalar_select %p501, %s500, 63
        %s503 = smul.addr %s502, 8
        %s504 = scalar_lea.vmem %s3, %s503
      $region44: #{convolution_forward.3} parent=39 // pred_fallthru
        _
    $region40: #{convolution_forward.3} parent=5 // pred_fallthru
      _
  $region6: #{convolution_forward.3} parent=0 // loop_footer
    %s13 = sadd.s32 1, %s9
  $region7: #{convolution_forward.3} parent=0 // loop_footer_branch
    %8 = sbr.rel target = $region3
  $region8: #{convolution_forward.3} parent=0 // loop_exit
    _

</llo_original>
